<compile_context>
chip_gen: v5e
topology: v5e:2x2
jax: 0.10.0
libtpu: 0.0.40
codegen_flags: <defaults>
</compile_context>

<pallas_src>
import jax
import jax.numpy as jnp
from jax.experimental import pallas as pl
from jax.experimental.pallas import tpu as pltpu

INPUT_SIZE = 28 * 28   # 784
HIDDEN_SIZE = 11
OUTPUT_SIZE = 10


def _round_up(n, m):
    return ((n + m - 1) // m) * m


def _mlp_kernel(x_ref, w1_ref, b1_ref, w2_ref, b2_ref, o_ref):
    # fc1: cast the streamed tile to bf16 on the VPU (free; HBM-bound kernel),
    # bf16 MXU matmul with f32 accumulation, f32 bias, ReLU.
    h = jnp.dot(x_ref[...].astype(jnp.bfloat16), w1_ref[...],
                preferred_element_type=jnp.float32)
    h = jnp.maximum(h + b1_ref[...], 0.0)          # b1 is (1, hidden) -> broadcast
    # fc2: bf16 MXU matmul (tiny), f32 accumulation, f32 bias.
    y = jnp.dot(h.astype(jnp.bfloat16), w2_ref[...],
                preferred_element_type=jnp.float32)
    o_ref[...] = (y + b2_ref[...]).astype(o_ref.dtype)


def two_layer_nn(x, w1, b1, w2, b2, *, block_rows=2048):
    """x: (B, 784); w1: (784, 11); b1: (1, 11); w2: (11, 10); b2: (1, 10).

    Returns (B, 10) float32 logits. Streams x in `block_rows`-row tiles straight
    from HBM (no wrapper-side cast or pad of x).
    """
    batch = x.shape[0]

    # Weights are tiny and DMA'd once -> a one-time wrapper cast is negligible.
    w1_bf = w1.astype(jnp.bfloat16)
    w2_bf = w2.astype(jnp.bfloat16)
    b1_f = b1.astype(jnp.float32)
    b2_f = b2.astype(jnp.float32)

    # Batch tile: multiple of 16 rows (covers f32 and bf16 sublane packing),
    # capped near the batch so small batches don't allocate an oversized block.
    tb = min(_round_up(block_rows, 16), _round_up(batch, 16))
    grid = (pl.cdiv(batch, tb),)

    # Advisory cost hint for the XLA scheduler (HBM-bound custom call).
    x_bytes = x.size * x.dtype.itemsize
    w_bytes = (w1_bf.size + w2_bf.size) * 2 + (b1_f.size + b2_f.size) * 4
    out_bytes = batch * OUTPUT_SIZE * 4
    flops = 2 * batch * INPUT_SIZE * HIDDEN_SIZE + 2 * batch * HIDDEN_SIZE * OUTPUT_SIZE

    out = pl.pallas_call(
        _mlp_kernel,
        out_shape=jax.ShapeDtypeStruct((batch, OUTPUT_SIZE), jnp.float32),
        grid=grid,
        in_specs=[
            # x: streamed, one batch tile per grid step (double-buffered by Pallas).
            pl.BlockSpec((tb, INPUT_SIZE), lambda i: (i, 0)),
            # Weights / biases: constant block index -> resident in VMEM, fetched once.
            pl.BlockSpec((INPUT_SIZE, HIDDEN_SIZE), lambda i: (0, 0)),
            pl.BlockSpec((1, HIDDEN_SIZE), lambda i: (0, 0)),
            pl.BlockSpec((HIDDEN_SIZE, OUTPUT_SIZE), lambda i: (0, 0)),
            pl.BlockSpec((1, OUTPUT_SIZE), lambda i: (0, 0)),
        ],
        out_specs=pl.BlockSpec((tb, OUTPUT_SIZE), lambda i: (i, 0)),
        compiler_params=pltpu.CompilerParams(
            dimension_semantics=("parallel",),      # shard batch tiles across TCs on v7x
            vmem_limit_bytes=32 * 1024 * 1024,      # 2048-row f32 tiles fit on v5e too
        ),
        cost_estimate=pl.CostEstimate(
            flops=flops,
            transcendentals=0,
            bytes_accessed=x_bytes + w_bytes + out_bytes,
        ),
    )(x, w1_bf, b1_f, w2_bf, b2_f)

    return out


def init_params(key):
    """Deterministic init matching PyTorch nn.Linear default: U(-1/sqrt(fan_in), +)."""
    k1, k2, k3, k4 = jax.random.split(key, 4)
    bound1 = 1.0 / jnp.sqrt(jnp.float32(INPUT_SIZE))
    bound2 = 1.0 / jnp.sqrt(jnp.float32(HIDDEN_SIZE))
    w1 = jax.random.uniform(k1, (INPUT_SIZE, HIDDEN_SIZE), jnp.float32,
                            minval=-bound1, maxval=bound1)
    b1 = jax.random.uniform(k2, (1, HIDDEN_SIZE), jnp.float32,
                            minval=-bound1, maxval=bound1)
    w2 = jax.random.uniform(k3, (HIDDEN_SIZE, OUTPUT_SIZE), jnp.float32,
                            minval=-bound2, maxval=bound2)
    b2 = jax.random.uniform(k4, (1, OUTPUT_SIZE), jnp.float32,
                            minval=-bound2, maxval=bound2)
    return w1, b1, w2, b2


if __name__ == "__main__":
    key = jax.random.PRNGKey(0)
    kx, kp = jax.random.split(key)

    # Small but non-trivial: batch=80 with block_rows=32 exercises multiple grid
    # steps (3 tiles) AND the ragged last tile (rows 64..95, only 64..79 real).
    batch = 80
    x = jax.random.normal(kx, (batch, INPUT_SIZE), jnp.float32)
    w1, b1, w2, b2 = init_params(kp)

    out = two_layer_nn(x, w1, b1, w2, b2, block_rows=32)
    out = jax.block_until_ready(out)

    # Pure-JAX reference replicating the kernel's bf16 rounding of x/W1/W2 and of
    # the post-ReLU activations, with f32 accumulation (same semantics as kernel).
    x_r = x.astype(jnp.bfloat16).astype(jnp.float32)
    w1_r = w1.astype(jnp.bfloat16).astype(jnp.float32)
    w2_r = w2.astype(jnp.bfloat16).astype(jnp.float32)
    h_r = jnp.maximum(x_r @ w1_r + b1, 0.0)
    h_r = h_r.astype(jnp.bfloat16).astype(jnp.float32)
    ref = h_r @ w2_r + b2

    assert out.shape == (batch, OUTPUT_SIZE)
    assert out.dtype == jnp.float32
    assert jnp.allclose(out, ref, atol=2e-3, rtol=2e-3)

    print("KERNEL_OK")
</pallas_src>

<mosaic_0001>
module attributes {stable_mosaic.version = 11 : i64} {
  func.func @_mlp_kernel(%arg0: i32, %arg1: memref<32x784xf32, #tpu.memory_space<vmem>>, %arg2: memref<784x11xbf16, #tpu.memory_space<vmem>>, %arg3: memref<1x11xf32, #tpu.memory_space<vmem>>, %arg4: memref<11x10xbf16, #tpu.memory_space<vmem>>, %arg5: memref<1x10xf32, #tpu.memory_space<vmem>>, %arg6: memref<32x10xf32, #tpu.memory_space<vmem>>) attributes {dimension_semantics = [#tpu.dimension_semantics<parallel>], iteration_bounds = array<i64: 3>, scalar_prefetch = 0 : i64, scratch_operands = 0 : i64, tpu.core_type = #tpu.core_type<tc>, window_params = [{transform_indices = @transform_0, window_bounds = array<i64: 32, 784>}, {pipeline_mode = #tpu.pipeline_mode<synchronous>, transform_indices = @transform_1, window_bounds = array<i64: 784, 11>}, {pipeline_mode = #tpu.pipeline_mode<synchronous>, transform_indices = @transform_2, window_bounds = array<i64: 1, 11>}, {pipeline_mode = #tpu.pipeline_mode<synchronous>, transform_indices = @transform_3, window_bounds = array<i64: 11, 10>}, {pipeline_mode = #tpu.pipeline_mode<synchronous>, transform_indices = @transform_4, window_bounds = array<i64: 1, 10>}, {transform_indices = @transform_5, window_bounds = array<i64: 32, 10>}]} {
    %c0 = arith.constant 0 : index
    %c0_0 = arith.constant 0 : index
    %0 = vector.load %arg1[%c0, %c0_0] : memref<32x784xf32, #tpu.memory_space<vmem>>, vector<32x784xf32>
    %1 = arith.truncf %0 : vector<32x784xf32> to vector<32x784xbf16>
    %c0_1 = arith.constant 0 : index
    %c0_2 = arith.constant 0 : index
    %2 = vector.load %arg2[%c0_1, %c0_2] : memref<784x11xbf16, #tpu.memory_space<vmem>>, vector<784x11xbf16>
    %cst = arith.constant dense<0.000000e+00> : vector<32x11xf32>
    %3 = tpu.matmul %1, %2, %cst {dimension_numbers = #tpu.dot_dimension_numbers<[1], [0], [0], [1], [0, 0, 1, 1], [], []>} : vector<32x784xbf16>, vector<784x11xbf16>, vector<32x11xf32> -> vector<32x11xf32>
    %c0_3 = arith.constant 0 : index
    %c0_4 = arith.constant 0 : index
    %4 = vector.load %arg3[%c0_3, %c0_4] : memref<1x11xf32, #tpu.memory_space<vmem>>, vector<1x11xf32>
    %5 = vector.broadcast %4 : vector<1x11xf32> to vector<32x11xf32>
    %6 = arith.addf %3, %5 : vector<32x11xf32>
    %cst_5 = arith.constant 0.000000e+00 : f32
    %7 = vector.broadcast %cst_5 : f32 to vector<32x11xf32>
    %8 = arith.maximumf %6, %7 : vector<32x11xf32>
    %9 = arith.truncf %8 : vector<32x11xf32> to vector<32x11xbf16>
    %c0_6 = arith.constant 0 : index
    %c0_7 = arith.constant 0 : index
    %10 = vector.load %arg4[%c0_6, %c0_7] : memref<11x10xbf16, #tpu.memory_space<vmem>>, vector<11x10xbf16>
    %cst_8 = arith.constant dense<0.000000e+00> : vector<32x10xf32>
    %11 = tpu.matmul %9, %10, %cst_8 {dimension_numbers = #tpu.dot_dimension_numbers<[1], [0], [0], [1], [0, 0, 1, 1], [], []>} : vector<32x11xbf16>, vector<11x10xbf16>, vector<32x10xf32> -> vector<32x10xf32>
    %c0_9 = arith.constant 0 : index
    %c0_10 = arith.constant 0 : index
    %12 = vector.load %arg5[%c0_9, %c0_10] : memref<1x10xf32, #tpu.memory_space<vmem>>, vector<1x10xf32>
    %13 = vector.broadcast %12 : vector<1x10xf32> to vector<32x10xf32>
    %14 = arith.addf %11, %13 : vector<32x10xf32>
    %c0_11 = arith.constant 0 : index
    %c0_12 = arith.constant 0 : index
    %15 = vector.load %arg6[%c0_11, %c0_12] : memref<32x10xf32, #tpu.memory_space<vmem>>, vector<32x10xf32>
    tpu.vector_store %arg6[%c0_11, %c0_12], %14 {strides = array<i32>} : memref<32x10xf32, #tpu.memory_space<vmem>>, vector<32x10xf32>,
    return
  }
  func.func @transform_0(%arg0: i32) -> (i32, i32) {
    %c0_i32 = arith.constant 0 : i32
    %c0_i32_0 = arith.constant 0 : i32
    return %arg0, %c0_i32 : i32, i32
  }
  func.func @transform_1(%arg0: i32) -> (i32, i32) {
    %c0_i32 = arith.constant 0 : i32
    %c0_i32_0 = arith.constant 0 : i32
    %c0_i32_1 = arith.constant 0 : i32
    return %c0_i32, %c0_i32_0 : i32, i32
  }
  func.func @transform_2(%arg0: i32) -> (i32, i32) {
    %c0_i32 = arith.constant 0 : i32
    %c0_i32_0 = arith.constant 0 : i32
    %c0_i32_1 = arith.constant 0 : i32
    return %c0_i32, %c0_i32_0 : i32, i32
  }
  func.func @transform_3(%arg0: i32) -> (i32, i32) {
    %c0_i32 = arith.constant 0 : i32
    %c0_i32_0 = arith.constant 0 : i32
    %c0_i32_1 = arith.constant 0 : i32
    return %c0_i32, %c0_i32_0 : i32, i32
  }
  func.func @transform_4(%arg0: i32) -> (i32, i32) {
    %c0_i32 = arith.constant 0 : i32
    %c0_i32_0 = arith.constant 0 : i32
    %c0_i32_1 = arith.constant 0 : i32
    return %c0_i32, %c0_i32_0 : i32, i32
  }
  func.func @transform_5(%arg0: i32) -> (i32, i32) {
    %c0_i32 = arith.constant 0 : i32
    %c0_i32_0 = arith.constant 0 : i32
    return %arg0, %c0_i32 : i32, i32
  }
}

</mosaic_0001>

<llo_original>
// kernel: tpu_custom_call.1
$region0: #{tpu_custom_call.1}
  #allocation0 [shape = 'u32[]', space=smem, size = 0x4, offset = 0x4, fixed_abs, tag = 'smem constant byte address 0x4 - core index']
  #allocation1 [shape = 'u32[72,128]{1,0:T(1,128)}', space=vmem, size = 0x9000, scoped, tag = 'internal scratch']
  %s0 = inlined_call_operand.hbm [shape: f32[80,784], index: 0, kind: input, shape index: {}]
  %s1 = inlined_call_operand.vmem [shape: bf16[784,11], index: 1, kind: input, shape index: {}]
  %s2 = inlined_call_operand.vmem [shape: f32[1,11], index: 2, kind: input, shape index: {}]
  %s3 = inlined_call_operand.vmem [shape: bf16[11,10], index: 3, kind: input, shape index: {}]
  %s4 = inlined_call_operand.vmem [shape: f32[1,10], index: 4, kind: input, shape index: {}]
  %s5 = inlined_call_operand.vmem [shape: f32[80,10], index: 5, kind: output, shape index: {}]
  %s6 = sld [smem:[#allocation0]]
  $region105: #{tpu_custom_call.1} parent=0
    _
  %s8 = ssub.s32 1, %s6
  %s9 = scalar_select 0, %s8, %s6
  $region1: #{tpu_custom_call.1} parent=0
    #allocation2 [shape = 'u8[229376]{0}', space=vmem, size = 0x38000, scoped, tag = 'input window, operand 0']
    #allocation3 [shape = 's32[2]{0}', space=sflag, size = 0x8, scoped, tag = 'scoped memory for tpu_custom_call.1']
    #allocation4 [shape = 'u8[32768]{0}', space=vmem, size = 0x8000, scoped, tag = 'output window, operand 0']
    %10 = vsyncpa [#allocation3], 0
    %s11 = scalar_lea.sflag [#allocation3], 1
    %12 = vsyncpa %s11, 0
    loop: start=0, step=1, limit=5
    $region2: #{tpu_custom_call.1} parent=1 // loop_pre_header
      _
    $region3: #{tpu_custom_call.1} parent=1 // loop_header
      %s14 = sphi 0, %s18
      %p15 = scmp.ge.s32.totalorder %s14, 5
      %s24 = sphi 0, %s26
      %s27 = sphi 0, %s24
      %s28 = sphi 0, %s27
      %s44 = sphi 0, %s28
      %s48 = sphi 0, %s48
      %s50 = sphi 0, %s48
      %s51 = sphi 0, %s50
      %s65 = sphi 0, %s51
      %s69 = sphi 0, %s69
      %s71 = sphi 0, %s69
      %s72 = sphi 0, %s71
      %s86 = sphi 0, %s72
      %s90 = sphi 0, %s90
      %s92 = sphi 0, %s90
      %s93 = sphi 0, %s92
      %s107 = sphi 0, %s93
      %s111 = sphi 0, %s111
      %s113 = sphi 0, %s111
      %s114 = sphi 0, %s113
      %s128 = sphi 0, %s114
      %s134 = sphi 0, %s136
      %s137 = sphi 0, %s134
      %s138 = sphi 0, %s137
      %s154 = sphi 0, %s138
    $region4: #{tpu_custom_call.1} parent=1 // loop_header_branch
      %17 = sbr.rel (%p15) target = $region8
    $region5: #{tpu_custom_call.1} parent=1 // loop_body
      %s19 = ssub.s32 %s14, 1
      %s20 = ssub.s32 %s14, 2
      %s21 = sadd.s32 %s14, 1
      %s22 = ssub.s32 %s14, %s21
      %p23 = scmp.eq.s32.totalorder %s22, 0
      %s25 = sadd.s32 %s24, 1
      %s26 = scalar_select %p23, %s24, %s25
      %p29 = pneg %p23
      %p30 = scmp.eq.s32.totalorder %s14, 2
      %p31 = por %p29, %p30
      %p32 = scmp.ne.s32.totalorder %s24, %s27
      %p33 = scmp.eq.s32.totalorder %s14, 0
      %p34 = por %p32, %p33
      %p35 = scmp.ne.s32.totalorder %s24, %s27
      %p36 = scmp.eq.s32.totalorder %s19, 2
      %p37 = por %p35, %p36
      %p38 = scmp.ne.s32.totalorder %s27, %s28
      %p39 = scmp.eq.s32.totalorder %s19, 0
      %p40 = por %p38, %p39
      %p41 = scmp.ne.s32.totalorder %s27, %s28
      %p42 = scmp.eq.s32.totalorder %s20, 2
      %p43 = por %p41, %p42
      %p45 = scmp.ne.s32.totalorder %s28, %s44
      %p46 = scmp.eq.s32.totalorder %s20, 0
      %p47 = por %p45, %p46
      %s49 = sadd.s32 %s48, 1
      %p52 = scmp.eq.s32.totalorder %s14, 2
      %p53 = scmp.ne.s32.totalorder %s48, %s50
      %p54 = scmp.eq.s32.totalorder %s14, 0
      %p55 = por %p53, %p54
      %p56 = scmp.ne.s32.totalorder %s48, %s50
      %p57 = scmp.eq.s32.totalorder %s19, 2
      %p58 = por %p56, %p57
      %p59 = scmp.ne.s32.totalorder %s50, %s51
      %p60 = scmp.eq.s32.totalorder %s19, 0
      %p61 = por %p59, %p60
      %p62 = scmp.ne.s32.totalorder %s50, %s51
      %p63 = scmp.eq.s32.totalorder %s20, 2
      %p64 = por %p62, %p63
      %p66 = scmp.ne.s32.totalorder %s51, %s65
      %p67 = scmp.eq.s32.totalorder %s20, 0
      %p68 = por %p66, %p67
      %s70 = sadd.s32 %s69, 1
      %p73 = scmp.eq.s32.totalorder %s14, 2
      %p74 = scmp.ne.s32.totalorder %s69, %s71
      %p75 = scmp.eq.s32.totalorder %s14, 0
      %p76 = por %p74, %p75
      %p77 = scmp.ne.s32.totalorder %s69, %s71
      %p78 = scmp.eq.s32.totalorder %s19, 2
      %p79 = por %p77, %p78
      %p80 = scmp.ne.s32.totalorder %s71, %s72
      %p81 = scmp.eq.s32.totalorder %s19, 0
      %p82 = por %p80, %p81
      %p83 = scmp.ne.s32.totalorder %s71, %s72
      %p84 = scmp.eq.s32.totalorder %s20, 2
      %p85 = por %p83, %p84
      %p87 = scmp.ne.s32.totalorder %s72, %s86
      %p88 = scmp.eq.s32.totalorder %s20, 0
      %p89 = por %p87, %p88
      %s91 = sadd.s32 %s90, 1
      %p94 = scmp.eq.s32.totalorder %s14, 2
      %p95 = scmp.ne.s32.totalorder %s90, %s92
      %p96 = scmp.eq.s32.totalorder %s14, 0
      %p97 = por %p95, %p96
      %p98 = scmp.ne.s32.totalorder %s90, %s92
      %p99 = scmp.eq.s32.totalorder %s19, 2
      %p100 = por %p98, %p99
      %p101 = scmp.ne.s32.totalorder %s92, %s93
      %p102 = scmp.eq.s32.totalorder %s19, 0
      %p103 = por %p101, %p102
      %p104 = scmp.ne.s32.totalorder %s92, %s93
      %p105 = scmp.eq.s32.totalorder %s20, 2
      %p106 = por %p104, %p105
      %p108 = scmp.ne.s32.totalorder %s93, %s107
      %p109 = scmp.eq.s32.totalorder %s20, 0
      %p110 = por %p108, %p109
      %s112 = sadd.s32 %s111, 1
      %p115 = scmp.eq.s32.totalorder %s14, 2
      %p116 = scmp.ne.s32.totalorder %s111, %s113
      %p117 = scmp.eq.s32.totalorder %s14, 0
      %p118 = por %p116, %p117
      %p119 = scmp.ne.s32.totalorder %s111, %s113
      %p120 = scmp.eq.s32.totalorder %s19, 2
      %p121 = por %p119, %p120
      %p122 = scmp.ne.s32.totalorder %s113, %s114
      %p123 = scmp.eq.s32.totalorder %s19, 0
      %p124 = por %p122, %p123
      %p125 = scmp.ne.s32.totalorder %s113, %s114
      %p126 = scmp.eq.s32.totalorder %s20, 2
      %p127 = por %p125, %p126
      %p129 = scmp.ne.s32.totalorder %s114, %s128
      %p130 = scmp.eq.s32.totalorder %s20, 0
      %p131 = por %p129, %p130
      %s132 = ssub.s32 %s14, %s21
      %p133 = scmp.eq.s32.totalorder %s132, 0
      %s135 = sadd.s32 %s134, 1
      %s136 = scalar_select %p133, %s134, %s135
      %p139 = pneg %p133
      %p140 = scmp.eq.s32.totalorder %s14, 2
      %p141 = por %p139, %p140
      %p142 = scmp.ne.s32.totalorder %s134, %s137
      %p143 = scmp.eq.s32.totalorder %s14, 0
      %p144 = por %p142, %p143
      %p145 = scmp.ne.s32.totalorder %s134, %s137
      %p146 = scmp.eq.s32.totalorder %s19, 2
      %p147 = por %p145, %p146
      %p148 = scmp.ne.s32.totalorder %s137, %s138
      %p149 = scmp.eq.s32.totalorder %s19, 0
      %p150 = por %p148, %p149
      %p151 = scmp.ne.s32.totalorder %s137, %s138
      %p152 = scmp.eq.s32.totalorder %s20, 2
      %p153 = por %p151, %p152
      %p155 = scmp.ne.s32.totalorder %s138, %s154
      %p156 = scmp.eq.s32.totalorder %s20, 0
      %p157 = por %p155, %p156
      %p158 = scmp.le.s32.totalorder 1, %s14
      %p159 = scmp.lt.s32.totalorder %s14, 4
      %p160 = pnand %p158, %p159
      %p161 = pneg %p160
      // Predicated region
      $region9: #{tpu_custom_call.1} parent=5 // pred_check
        _
      $region10: #{tpu_custom_call.1} parent=5 // pred_check_branch
        %163 = sbr.rel (%p160) target = $region12
      $region11: #{tpu_custom_call.1} parent=5 // pred_region
        %s164 = ssub.s32 %s14, 1
        // Predicated region
        $region13: #{tpu_custom_call.1} parent=11 // pred_check
          %p165 = pneg %p61
        $region14: #{tpu_custom_call.1} parent=11 // pred_check_branch
          %167 = sbr.rel (%p165) target = $region16
        $region15: #{tpu_custom_call.1} parent=11 // pred_region
          _
        $region16: #{tpu_custom_call.1} parent=11 // pred_fallthru
          _
        // Predicated region
        $region17: #{tpu_custom_call.1} parent=11 // pred_check
          %p168 = pneg %p82
        $region18: #{tpu_custom_call.1} parent=11 // pred_check_branch
          %170 = sbr.rel (%p168) target = $region20
        $region19: #{tpu_custom_call.1} parent=11 // pred_region
          _
        $region20: #{tpu_custom_call.1} parent=11 // pred_fallthru
          _
        // Predicated region
        $region21: #{tpu_custom_call.1} parent=11 // pred_check
          %p171 = pneg %p103
        $region22: #{tpu_custom_call.1} parent=11 // pred_check_branch
          %173 = sbr.rel (%p171) target = $region24
        $region23: #{tpu_custom_call.1} parent=11 // pred_region
          _
        $region24: #{tpu_custom_call.1} parent=11 // pred_fallthru
          _
        // Predicated region
        $region25: #{tpu_custom_call.1} parent=11 // pred_check
          %p174 = pneg %p124
        $region26: #{tpu_custom_call.1} parent=11 // pred_check_branch
          %176 = sbr.rel (%p174) target = $region28
        $region27: #{tpu_custom_call.1} parent=11 // pred_region
          _
        $region28: #{tpu_custom_call.1} parent=11 // pred_fallthru
          _
      $region12: #{tpu_custom_call.1} parent=5 // pred_fallthru
        _
      %p177 = scmp.lt.s32.totalorder %s14, 3
      // Predicated region
      $region29: #{tpu_custom_call.1} parent=5 // pred_check
        %p178 = pneg %p177
      $region30: #{tpu_custom_call.1} parent=5 // pred_check_branch
        %180 = sbr.rel (%p178) target = $region32
      $region31: #{tpu_custom_call.1} parent=5 // pred_region
        // Predicated region
        $region33: #{tpu_custom_call.1} parent=31 // pred_check
          %p181 = pneg %p34
        $region34: #{tpu_custom_call.1} parent=31 // pred_check_branch
          %183 = sbr.rel (%p181) target = $region36
        $region35: #{tpu_custom_call.1} parent=31 // pred_region
          %s184 = sand.u32 %s24, 1
          %s185 = scalar_lea.sflag [#allocation3], %s184
          %s186 = sand.u32 %s24, 1
          %s187 = smul.addr %s186, 224
          %s188 = scalar_lea.vmem [#allocation2], %s187
          %s189 = smul.u32 4, %s14
          %s190 = ssub.s32 10, %s189
          %p191 = scmp.lt.s32.totalorder %s190, 4
          %s192 = scalar_select %p191, %s190, 4
          %s193 = smul.u32 8, %s192
          %s194 = smul.u32 %s193, 7
          %s195 = ssub.s32 224, %s194
          %s196 = sshll.u32 %s195, 4
          %197 = vsyncadd %s185, %s196
          %p198 = scmp.ne.s32.totalorder 0, %s194
          %s199 = smul.addr %s189, 7
          %s200 = smul.addr %s199, 8
          %s201 = scalar_lea.hbm %s0, %s200
          %s202 = smul.u32 56, %s192
          %s203 = sshll.u32 %s201, 4
          %s204 = int_to_ptr.hbm [resolvable:$true] %s203
          %s205 = sshll.u32 %s188, 4
          %s206 = int_to_ptr.vmem [resolvable:$true] %s205
          %s207 = sshll.u32 %s202, 4
          %211 = dma.hbm_to_vmem [thread:$0]  (%p198), %s204, %s207, %s206, %s185, 896, 896, 56
        $region36: #{tpu_custom_call.1} parent=31 // pred_fallthru
          _
      $region32: #{tpu_custom_call.1} parent=5 // pred_fallthru
        _
      %p212 = scmp.le.s32.totalorder 1, %s14
      %p213 = scmp.lt.s32.totalorder %s14, 4
      %p214 = pnand %p212, %p213
      %p215 = pneg %p214
      // Predicated region
      $region37: #{tpu_custom_call.1} parent=5 // pred_check
        _
      $region38: #{tpu_custom_call.1} parent=5 // pred_check_branch
        %217 = sbr.rel (%p214) target = $region40
      $region39: #{tpu_custom_call.1} parent=5 // pred_region
        %s218 = ssub.s32 %s14, 1
        %s219 = sand.u32 %s27, 1
        %s220 = scalar_lea.sflag [#allocation3], %s219
        %s221 = sand.u32 %s27, 1
        %s222 = smul.addr %s221, 224
        %s223 = scalar_lea.vmem [#allocation2], %s222
        // Predicated region
        $region41: #{tpu_custom_call.1} parent=39 // pred_check
          %p224 = pneg %p40
        $region42: #{tpu_custom_call.1} parent=39 // pred_check_branch
          %226 = sbr.rel (%p224) target = $region44
        $region43: #{tpu_custom_call.1} parent=39 // pred_region
          %228 = dma.done %s220, 3584
        $region44: #{tpu_custom_call.1} parent=39 // pred_fallthru
          _
        %s229 = sand.u32 %s27, 1
        %s230 = scalar_lea.sflag [#allocation3], %s229
        %s231 = sand.u32 %s27, 1
        %s232 = smul.addr %s231, 224
        %s233 = scalar_lea.vmem [#allocation2], %s232
        %p234 = pneg %p40
        %p235 = pneg %p37
        %p236 = pneg %p61
        %p237 = pneg %p58
        %p238 = pneg %p82
        %p239 = pneg %p79
        %p240 = pneg %p103
        %p241 = pneg %p100
        %p242 = pneg %p124
        %p243 = pneg %p121
        %p244 = pneg %p150
        %p245 = pneg %p147
        %s246 = sand.u32 %s137, 1
        %s247 = sand.u32 %s137, 1
        %s248 = smul.addr %s247, 32
        %s249 = scalar_lea.vmem [#allocation4], %s248
        %s250 = smul.u32 4, %s19
        %s251 = ssub.s32 10, %s250
        %p252 = scmp.lt.s32.totalorder %s251, 4
        %s253 = scalar_select %p252, %s251, 4
        %s254 = smul.u32 8, %s253
        %s255 = smul.u32 %s254, 7
        %s256 = smul.u32 4, %s19
        %s257 = ssub.s32 10, %s256
        %p258 = scmp.lt.s32.totalorder %s257, 4
        %s259 = scalar_select %p258, %s257, 4
        %s260 = smul.u32 8, %s259
        %v262 = vld [vmem:[%s223] sm:$0xff]
        %v263 = vld [vmem:[%s223 + $0x8] sm:$0xff]
        %v264 = vld [vmem:[%s223 + $0x10] sm:$0xff]
        %v265 = vld [vmem:[%s223 + $0x18] sm:$0xff]
        %v266 = vld [vmem:[%s223 + $0x20] sm:$0xff]
        %v267 = vld [vmem:[%s223 + $0x28] sm:$0xff]
        %v268 = vld [vmem:[%s223 + $0x30] sm:$0xff]
        %v269 = vld [vmem:[%s223 + $0x38] sm:$0xff]
        %v270 = vld [vmem:[%s223 + $0x40] sm:$0xff]
        %v271 = vld [vmem:[%s223 + $0x48] sm:$0xff]
        %v272 = vld [vmem:[%s223 + $0x50] sm:$0xff]
        %v273 = vld [vmem:[%s223 + $0x58] sm:$0xff]
        %v274 = vld [vmem:[%s223 + $0x60] sm:$0xff]
        %v275 = vld [vmem:[%s223 + $0x68] sm:$0xff]
        %v276 = vld [vmem:[%s223 + $0x70] sm:$0xff]
        %v277 = vld [vmem:[%s223 + $0x78] sm:$0xff]
        %v278 = vld [vmem:[%s223 + $0x80] sm:$0xff]
        %v279 = vld [vmem:[%s223 + $0x88] sm:$0xff]
        %v280 = vld [vmem:[%s223 + $0x90] sm:$0xff]
        %v281 = vld [vmem:[%s223 + $0x98] sm:$0xff]
        %v282 = vld [vmem:[%s223 + $0xa0] sm:$0xff]
        %v283 = vld [vmem:[%s223 + $0xa8] sm:$0xff]
        %v284 = vld [vmem:[%s223 + $0xb0] sm:$0xff]
        %v285 = vld [vmem:[%s223 + $0xb8] sm:$0xff]
        %v286 = vld [vmem:[%s223 + $0xc0] sm:$0xff]
        %v287 = vld [vmem:[%s223 + $0xc8] sm:$0xff]
        %v288 = vld [vmem:[%s223 + $0xd0] sm:$0xff]
        %v289 = vld [vmem:[%s223 + $0xd8] sm:$0xff]
        %v290 = vpack.c.bf16 %v269, %v262
        %v291 = vpack.c.bf16 %v270, %v263
        %v292 = vpack.c.bf16 %v271, %v264
        %v293 = vpack.c.bf16 %v272, %v265
        %v294 = vpack.c.bf16 %v273, %v266
        %v295 = vpack.c.bf16 %v274, %v267
        %v296 = vpack.c.bf16 %v275, %v268
        %v297 = vpack.c.bf16 %v283, %v276
        %v298 = vpack.c.bf16 %v284, %v277
        %v299 = vpack.c.bf16 %v285, %v278
        %v300 = vpack.c.bf16 %v286, %v279
        %v301 = vpack.c.bf16 %v287, %v280
        %v302 = vpack.c.bf16 %v288, %v281
        %v303 = vpack.c.bf16 %v289, %v282
        %v304 = vld [vmem:[%s1] sm:$0xf]
        %v305 = vld [vmem:[%s1 + $0x4] sm:$0xf]
        %v306 = vld [vmem:[%s1 + $0x8] sm:$0xf]
        %v307 = vld [vmem:[%s1 + $0xc] sm:$0xf]
        %v308 = vld [vmem:[%s1 + $0x10] sm:$0xf]
        %v309 = vld [vmem:[%s1 + $0x14] sm:$0xf]
        %v310 = vld [vmem:[%s1 + $0x18] sm:$0xf]
        %v311 = vld [vmem:[%s1 + $0x1c] sm:$0xf]
        %v312 = vld [vmem:[%s1 + $0x20] sm:$0xf]
        %v313 = vld [vmem:[%s1 + $0x24] sm:$0xf]
        %v314 = vld [vmem:[%s1 + $0x28] sm:$0xf]
        %v315 = vld [vmem:[%s1 + $0x2c] sm:$0xf]
        %v316 = vld [vmem:[%s1 + $0x30] sm:$0xf]
        %v317 = vld [vmem:[%s1 + $0x34] sm:$0xf]
        %v318 = vld [vmem:[%s1 + $0x38] sm:$0xf]
        %v319 = vld [vmem:[%s1 + $0x3c] sm:$0xf]
        %v320 = vld [vmem:[%s1 + $0x40] sm:$0xf]
        %v321 = vld [vmem:[%s1 + $0x44] sm:$0xf]
        %v322 = vld [vmem:[%s1 + $0x48] sm:$0xf]
        %v323 = vld [vmem:[%s1 + $0x4c] sm:$0xf]
        %v324 = vld [vmem:[%s1 + $0x50] sm:$0xf]
        %v325 = vld [vmem:[%s1 + $0x54] sm:$0xf]
        %v326 = vld [vmem:[%s1 + $0x58] sm:$0xf]
        %v327 = vld [vmem:[%s1 + $0x5c] sm:$0xf]
        %v328 = vld [vmem:[%s1 + $0x60] sm:$0xf]
        %v329 = vld [vmem:[%s1 + $0x64] sm:$0xf]
        %v330 = vld [vmem:[%s1 + $0x68] sm:$0xf]
        %v331 = vld [vmem:[%s1 + $0x6c] sm:$0xf]
        %v332 = vld [vmem:[%s1 + $0x70] sm:$0xf]
        %v333 = vld [vmem:[%s1 + $0x74] sm:$0xf]
        %v334 = vld [vmem:[%s1 + $0x78] sm:$0xf]
        %v335 = vld [vmem:[%s1 + $0x7c] sm:$0xf]
        %v336 = vld [vmem:[%s1 + $0x80] sm:$0xf]
        %v337 = vld [vmem:[%s1 + $0x84] sm:$0xf]
        %v338 = vld [vmem:[%s1 + $0x88] sm:$0xf]
        %v339 = vld [vmem:[%s1 + $0x8c] sm:$0xf]
        %v340 = vld [vmem:[%s1 + $0x90] sm:$0xf]
        %v341 = vld [vmem:[%s1 + $0x94] sm:$0xf]
        %v342 = vld [vmem:[%s1 + $0x98] sm:$0xf]
        %v343 = vld [vmem:[%s1 + $0x9c] sm:$0xf]
        %v344 = vld [vmem:[%s1 + $0xa0] sm:$0xf]
        %v345 = vld [vmem:[%s1 + $0xa4] sm:$0xf]
        %v346 = vld [vmem:[%s1 + $0xa8] sm:$0xf]
        %v347 = vld [vmem:[%s1 + $0xac] sm:$0xf]
        %v348 = vld [vmem:[%s1 + $0xb0] sm:$0xf]
        %v349 = vld [vmem:[%s1 + $0xb4] sm:$0xf]
        %v350 = vld [vmem:[%s1 + $0xb8] sm:$0xf]
        %v351 = vld [vmem:[%s1 + $0xbc] sm:$0xf]
        %v352 = vld [vmem:[%s1 + $0xc0] sm:$0xf]
        %v353 = vld [vmem:[%s1 + $0xc4] sm:$0xf]
        %v354 = vld [vmem:[%s1 + $0xc8] sm:$0xf]
        %v355 = vld [vmem:[%s1 + $0xcc] sm:$0xf]
        %v356 = vld [vmem:[%s1 + $0xd0] sm:$0xf]
        %v357 = vld [vmem:[%s1 + $0xd4] sm:$0xf]
        %v358 = vld [vmem:[%s1 + $0xd8] sm:$0xf]
        %v359 = vld [vmem:[%s1 + $0xdc] sm:$0xf]
        %v360 = vld [vmem:[%s1 + $0xe0] sm:$0xf]
        %v361 = vld [vmem:[%s1 + $0xe4] sm:$0xf]
        %v362 = vld [vmem:[%s1 + $0xe8] sm:$0xf]
        %v363 = vld [vmem:[%s1 + $0xec] sm:$0xf]
        %v364 = vld [vmem:[%s1 + $0xf0] sm:$0xf]
        %v365 = vld [vmem:[%s1 + $0xf4] sm:$0xf]
        %v366 = vld [vmem:[%s1 + $0xf8] sm:$0xf]
        %v367 = vld [vmem:[%s1 + $0xfc] sm:$0xf]
        %v368 = vld [vmem:[%s1 + $0x100] sm:$0xf]
        %v369 = vld [vmem:[%s1 + $0x104] sm:$0xf]
        %v370 = vld [vmem:[%s1 + $0x108] sm:$0xf]
        %v371 = vld [vmem:[%s1 + $0x10c] sm:$0xf]
        %v372 = vld [vmem:[%s1 + $0x110] sm:$0xf]
        %v373 = vld [vmem:[%s1 + $0x114] sm:$0xf]
        %v374 = vld [vmem:[%s1 + $0x118] sm:$0xf]
        %v375 = vld [vmem:[%s1 + $0x11c] sm:$0xf]
        %v376 = vld [vmem:[%s1 + $0x120] sm:$0xf]
        %v377 = vld [vmem:[%s1 + $0x124] sm:$0xf]
        %v378 = vld [vmem:[%s1 + $0x128] sm:$0xf]
        %v379 = vld [vmem:[%s1 + $0x12c] sm:$0xf]
        %v380 = vld [vmem:[%s1 + $0x130] sm:$0xf]
        %v381 = vld [vmem:[%s1 + $0x134] sm:$0xf]
        %v382 = vld [vmem:[%s1 + $0x138] sm:$0xf]
        %v383 = vld [vmem:[%s1 + $0x13c] sm:$0xf]
        %v384 = vld [vmem:[%s1 + $0x140] sm:$0xf]
        %v385 = vld [vmem:[%s1 + $0x144] sm:$0xf]
        %v386 = vld [vmem:[%s1 + $0x148] sm:$0xf]
        %v387 = vld [vmem:[%s1 + $0x14c] sm:$0xf]
        %v388 = vld [vmem:[%s1 + $0x150] sm:$0xf]
        %v389 = vld [vmem:[%s1 + $0x154] sm:$0xf]
        %v390 = vld [vmem:[%s1 + $0x158] sm:$0xf]
        %v391 = vld [vmem:[%s1 + $0x15c] sm:$0xf]
        %v392 = vld [vmem:[%s1 + $0x160] sm:$0xf]
        %v393 = vld [vmem:[%s1 + $0x164] sm:$0xf]
        %v394 = vld [vmem:[%s1 + $0x168] sm:$0xf]
        %v395 = vld [vmem:[%s1 + $0x16c] sm:$0xf]
        %v396 = vld [vmem:[%s1 + $0x170] sm:$0xf]
        %v397 = vld [vmem:[%s1 + $0x174] sm:$0xf]
        %v398 = vld [vmem:[%s1 + $0x178] sm:$0xf]
        %v399 = vld [vmem:[%s1 + $0x17c] sm:$0xf]
        %v400 = vld [vmem:[%s1 + $0x180] sm:$0xf]
        %v401 = vld [vmem:[%s1 + $0x184] sm:$0xf]
        %v402 = vld [vmem:[%s2] sm:$0x1]
        %v404 = vperm.slane %v402, 0
        %v504 = vunpack.c.l.b16 %v304
        %v505 = vunpack.c.l.b16 %v305
        %v506 = vunpack.c.l.b16 %v306
        %v507 = vunpack.c.l.b16 %v307
        %v508 = vunpack.c.l.b16 %v308
        %v509 = vunpack.c.l.b16 %v309
        %v510 = vunpack.c.l.b16 %v310
        %v511 = vunpack.c.l.b16 %v311
        %v512 = vunpack.c.l.b16 %v312
        %v513 = vunpack.c.l.b16 %v313
        %v514 = vunpack.c.l.b16 %v314
        %v515 = vunpack.c.l.b16 %v315
        %v516 = vunpack.c.l.b16 %v316
        %v517 = vunpack.c.l.b16 %v317
        %v518 = vunpack.c.l.b16 %v318
        %v519 = vunpack.c.l.b16 %v319
        %v520 = vunpack.c.l.b16 %v320
        %v521 = vunpack.c.l.b16 %v321
        %v522 = vunpack.c.l.b16 %v322
        %v523 = vunpack.c.l.b16 %v323
        %v524 = vunpack.c.l.b16 %v324
        %v525 = vunpack.c.l.b16 %v325
        %v526 = vunpack.c.l.b16 %v326
        %v527 = vunpack.c.l.b16 %v327
        %v528 = vunpack.c.l.b16 %v328
        %v529 = vunpack.c.l.b16 %v329
        %v530 = vunpack.c.l.b16 %v330
        %v531 = vunpack.c.l.b16 %v331
        %v532 = vunpack.c.l.b16 %v332
        %v533 = vunpack.c.l.b16 %v333
        %v534 = vunpack.c.l.b16 %v334
        %v535 = vunpack.c.l.b16 %v335
        %v536 = vunpack.c.l.b16 %v336
        %v537 = vunpack.c.l.b16 %v337
        %v538 = vunpack.c.l.b16 %v338
        %v539 = vunpack.c.l.b16 %v339
        %v540 = vunpack.c.l.b16 %v340
        %v541 = vunpack.c.l.b16 %v341
        %v542 = vunpack.c.l.b16 %v342
        %v543 = vunpack.c.l.b16 %v343
        %v544 = vunpack.c.l.b16 %v344
        %v545 = vunpack.c.l.b16 %v345
        %v546 = vunpack.c.l.b16 %v346
        %v547 = vunpack.c.l.b16 %v347
        %v548 = vunpack.c.l.b16 %v348
        %v549 = vunpack.c.l.b16 %v349
        %v550 = vunpack.c.l.b16 %v350
        %v551 = vunpack.c.l.b16 %v351
        %v552 = vunpack.c.l.b16 %v352
        %v553 = vunpack.c.l.b16 %v353
        %v554 = vunpack.c.l.b16 %v354
        %v555 = vunpack.c.l.b16 %v355
        %v556 = vunpack.c.l.b16 %v356
        %v557 = vunpack.c.l.b16 %v357
        %v558 = vunpack.c.l.b16 %v358
        %v559 = vunpack.c.l.b16 %v359
        %v560 = vunpack.c.l.b16 %v360
        %v561 = vunpack.c.l.b16 %v361
        %v562 = vunpack.c.l.b16 %v362
        %v563 = vunpack.c.l.b16 %v363
        %v564 = vunpack.c.l.b16 %v364
        %v565 = vunpack.c.l.b16 %v365
        %v566 = vunpack.c.l.b16 %v366
        %v567 = vunpack.c.l.b16 %v367
        %v568 = vunpack.c.l.b16 %v368
        %v569 = vunpack.c.l.b16 %v369
        %v570 = vunpack.c.l.b16 %v370
        %v571 = vunpack.c.l.b16 %v371
        %v572 = vunpack.c.l.b16 %v372
        %v573 = vunpack.c.l.b16 %v373
        %v574 = vunpack.c.l.b16 %v374
        %v575 = vunpack.c.l.b16 %v375
        %v576 = vunpack.c.l.b16 %v376
        %v577 = vunpack.c.l.b16 %v377
        %v578 = vunpack.c.l.b16 %v378
        %v579 = vunpack.c.l.b16 %v379
        %v580 = vunpack.c.l.b16 %v380
        %v581 = vunpack.c.l.b16 %v381
        %v582 = vunpack.c.l.b16 %v382
        %v583 = vunpack.c.l.b16 %v383
        %v584 = vunpack.c.l.b16 %v384
        %v585 = vunpack.c.l.b16 %v385
        %v586 = vunpack.c.l.b16 %v386
        %v587 = vunpack.c.l.b16 %v387
        %v588 = vunpack.c.l.b16 %v388
        %v589 = vunpack.c.l.b16 %v389
        %v590 = vunpack.c.l.b16 %v390
        %v591 = vunpack.c.l.b16 %v391
        %v592 = vunpack.c.l.b16 %v392
        %v593 = vunpack.c.l.b16 %v393
        %v594 = vunpack.c.l.b16 %v394
        %v595 = vunpack.c.l.b16 %v395
        %v596 = vunpack.c.l.b16 %v396
        %v597 = vunpack.c.l.b16 %v397
        %v598 = vunpack.c.l.b16 %v398
        %v599 = vunpack.c.l.b16 %v399
        %v600 = vunpack.c.l.b16 %v400
        %v601 = vunpack.c.l.b16 %v401
        %v602 = vpack.c.b16 %v505, %v504
        %v603 = vpack.c.b16 %v507, %v506
        %v604 = vpack.c.b16 %v509, %v508
        %v605 = vpack.c.b16 %v511, %v510
        %v606 = vpack.c.b16 %v513, %v512
        %v607 = vpack.c.b16 %v515, %v514
        %v608 = vpack.c.b16 %v517, %v516
        %v609 = vpack.c.b16 %v519, %v518
        %v610 = vpack.c.b16 %v521, %v520
        %v611 = vpack.c.b16 %v523, %v522
        %v612 = vpack.c.b16 %v525, %v524
        %v613 = vpack.c.b16 %v527, %v526
        %v614 = vpack.c.b16 %v529, %v528
        %v615 = vpack.c.b16 %v531, %v530
        %v616 = vpack.c.b16 %v533, %v532
        %v617 = vpack.c.b16 %v535, %v534
        %v618 = vpack.c.b16 %v537, %v536
        %v619 = vpack.c.b16 %v539, %v538
        %v620 = vpack.c.b16 %v541, %v540
        %v621 = vpack.c.b16 %v543, %v542
        %v622 = vpack.c.b16 %v545, %v544
        %v623 = vpack.c.b16 %v547, %v546
        %v624 = vpack.c.b16 %v549, %v548
        %v625 = vpack.c.b16 %v551, %v550
        %v626 = vpack.c.b16 %v553, %v552
        %v627 = vpack.c.b16 %v555, %v554
        %v628 = vpack.c.b16 %v557, %v556
        %v629 = vpack.c.b16 %v559, %v558
        %v630 = vpack.c.b16 %v561, %v560
        %v631 = vpack.c.b16 %v563, %v562
        %v632 = vpack.c.b16 %v565, %v564
        %v633 = vpack.c.b16 %v567, %v566
        %v634 = vpack.c.b16 %v569, %v568
        %v635 = vpack.c.b16 %v571, %v570
        %v636 = vpack.c.b16 %v573, %v572
        %v637 = vpack.c.b16 %v575, %v574
        %v638 = vpack.c.b16 %v577, %v576
        %v639 = vpack.c.b16 %v579, %v578
        %v640 = vpack.c.b16 %v581, %v580
        %v641 = vpack.c.b16 %v583, %v582
        %v642 = vpack.c.b16 %v585, %v584
        %v643 = vpack.c.b16 %v587, %v586
        %v644 = vpack.c.b16 %v589, %v588
        %v645 = vpack.c.b16 %v591, %v590
        %v646 = vpack.c.b16 %v593, %v592
        %v647 = vpack.c.b16 %v595, %v594
        %v648 = vpack.c.b16 %v597, %v596
        %v649 = vpack.c.b16 %v599, %v598
        %v650 = vpack.c.b16 %v601, %v600
        %vm700 = vcmask 130048
        %v702 = vsel %vm700, %v296, 0
        %v705 = vsel %vm700, %v303, 0
        %707 = vmatpush.bf16.msra.mxu0 %v609
        %708 = vmatpush.bf16.msra.mxu0 %v608
        %709 = vmatpush.bf16.msra.mxu0 %v607
        %710 = vmatpush.bf16.msra.mxu0 %v606
        %711 = vmatpush.bf16.msra.mxu0 %v605
        %712 = vmatpush.bf16.msra.mxu0 %v604
        %713 = vmatpush.bf16.msra.mxu0 %v603
        %714 = vmatpush.bf16.msra.mxu0 %v602
        %715 = vmatmul.bf16.gmra.mxu0 %v290
        %v716 = vpop.f32.mrf.mxu0
        %v717 = vadd.f32 %v404, %v716
        %v718 = vpop.f32.mrf.mxu0
        %v719 = vadd.f32 %v404, %v718
        %720 = vmatmul.bf16.gmra.mxu0 %v297
        %v721 = vpop.f32.mrf.mxu0
        %v722 = vadd.f32 %v404, %v721
        %v723 = vpop.f32.mrf.mxu0
        %v724 = vadd.f32 %v404, %v723
        %725 = vdwg.mxu0
        %726 = vmatpush.bf16.msra.mxu0 %v617
        %727 = vmatpush.bf16.msra.mxu0 %v616
        %728 = vmatpush.bf16.msra.mxu0 %v615
        %729 = vmatpush.bf16.msra.mxu0 %v614
        %730 = vmatpush.bf16.msra.mxu0 %v613
        %731 = vmatpush.bf16.msra.mxu0 %v612
        %732 = vmatpush.bf16.msra.mxu0 %v611
        %733 = vmatpush.bf16.msra.mxu0 %v610
        %734 = vmatmul.bf16.gmra.mxu0 %v291
        %v735 = vpop.f32.mrf.mxu0
        %v736 = vadd.f32 %v717, %v735
        %v737 = vpop.f32.mrf.mxu0
        %v738 = vadd.f32 %v719, %v737
        %739 = vmatmul.bf16.gmra.mxu0 %v298
        %v740 = vpop.f32.mrf.mxu0
        %v741 = vadd.f32 %v722, %v740
        %v742 = vpop.f32.mrf.mxu0
        %v743 = vadd.f32 %v724, %v742
        %744 = vdwg.mxu0
        %745 = vmatpush.bf16.msra.mxu0 %v625
        %746 = vmatpush.bf16.msra.mxu0 %v624
        %747 = vmatpush.bf16.msra.mxu0 %v623
        %748 = vmatpush.bf16.msra.mxu0 %v622
        %749 = vmatpush.bf16.msra.mxu0 %v621
        %750 = vmatpush.bf16.msra.mxu0 %v620
        %751 = vmatpush.bf16.msra.mxu0 %v619
        %752 = vmatpush.bf16.msra.mxu0 %v618
        %753 = vmatmul.bf16.gmra.mxu0 %v292
        %v754 = vpop.f32.mrf.mxu0
        %v755 = vadd.f32 %v736, %v754
        %v756 = vpop.f32.mrf.mxu0
        %v757 = vadd.f32 %v738, %v756
        %758 = vmatmul.bf16.gmra.mxu0 %v299
        %v759 = vpop.f32.mrf.mxu0
        %v760 = vadd.f32 %v741, %v759
        %v761 = vpop.f32.mrf.mxu0
        %v762 = vadd.f32 %v743, %v761
        %763 = vdwg.mxu0
        %764 = vmatpush.bf16.msra.mxu0 %v633
        %765 = vmatpush.bf16.msra.mxu0 %v632
        %766 = vmatpush.bf16.msra.mxu0 %v631
        %767 = vmatpush.bf16.msra.mxu0 %v630
        %768 = vmatpush.bf16.msra.mxu0 %v629
        %769 = vmatpush.bf16.msra.mxu0 %v628
        %770 = vmatpush.bf16.msra.mxu0 %v627
        %771 = vmatpush.bf16.msra.mxu0 %v626
        %772 = vmatmul.bf16.gmra.mxu0 %v293
        %v773 = vpop.f32.mrf.mxu0
        %v774 = vadd.f32 %v755, %v773
        %v775 = vpop.f32.mrf.mxu0
        %v776 = vadd.f32 %v757, %v775
        %777 = vmatmul.bf16.gmra.mxu0 %v300
        %v778 = vpop.f32.mrf.mxu0
        %v779 = vadd.f32 %v760, %v778
        %v780 = vpop.f32.mrf.mxu0
        %v781 = vadd.f32 %v762, %v780
        %782 = vdwg.mxu0
        %783 = vmatpush.bf16.msra.mxu0 %v641
        %784 = vmatpush.bf16.msra.mxu0 %v640
        %785 = vmatpush.bf16.msra.mxu0 %v639
        %786 = vmatpush.bf16.msra.mxu0 %v638
        %787 = vmatpush.bf16.msra.mxu0 %v637
        %788 = vmatpush.bf16.msra.mxu0 %v636
        %789 = vmatpush.bf16.msra.mxu0 %v635
        %790 = vmatpush.bf16.msra.mxu0 %v634
        %791 = vmatmul.bf16.gmra.mxu0 %v294
        %v792 = vpop.f32.mrf.mxu0
        %v793 = vadd.f32 %v774, %v792
        %v794 = vpop.f32.mrf.mxu0
        %v795 = vadd.f32 %v776, %v794
        %796 = vmatmul.bf16.gmra.mxu0 %v301
        %v797 = vpop.f32.mrf.mxu0
        %v798 = vadd.f32 %v779, %v797
        %v799 = vpop.f32.mrf.mxu0
        %v800 = vadd.f32 %v781, %v799
        %801 = vdwg.mxu0
        %802 = vmatpush.bf16.msra.mxu0 %v649
        %803 = vmatpush.bf16.msra.mxu0 %v648
        %804 = vmatpush.bf16.msra.mxu0 %v647
        %805 = vmatpush.bf16.msra.mxu0 %v646
        %806 = vmatpush.bf16.msra.mxu0 %v645
        %807 = vmatpush.bf16.msra.mxu0 %v644
        %808 = vmatpush.bf16.msra.mxu0 %v643
        %809 = vmatpush.bf16.msra.mxu0 %v642
        %810 = vmatmul.bf16.gmra.mxu0 %v295
        %v811 = vpop.f32.mrf.mxu0
        %v812 = vadd.f32 %v793, %v811
        %v813 = vpop.f32.mrf.mxu0
        %v814 = vadd.f32 %v795, %v813
        %815 = vmatmul.bf16.gmra.mxu0 %v302
        %v816 = vpop.f32.mrf.mxu0
        %v817 = vadd.f32 %v798, %v816
        %v818 = vpop.f32.mrf.mxu0
        %v819 = vadd.f32 %v800, %v818
        %820 = vdwg.mxu0
        %821 = vmatpush.bf16.msra.mxu0 0
        %822 = vmatpush.bf16.msra.mxu0 0
        %823 = vmatpush.bf16.msra.mxu0 0
        %824 = vmatpush.bf16.msra.mxu0 0
        %825 = vmatpush.bf16.msra.mxu0 0
        %826 = vmatpush.bf16.msra.mxu0 0
        %827 = vmatpush.bf16.msra.mxu0 0
        %828 = vmatpush.bf16.msra.mxu0 %v650
        %829 = vmatmul.bf16.gmra.mxu0 %v702
        %v830 = vpop.f32.mrf.mxu0
        %v831 = vadd.f32 %v812, %v830
        %v832 = vpop.f32.mrf.mxu0
        %v833 = vadd.f32 %v814, %v832
        %834 = vmatmul.bf16.gmra.mxu0 %v705
        %v835 = vpop.f32.mrf.mxu0
        %v836 = vadd.f32 %v817, %v835
        %v837 = vpop.f32.mrf.mxu0
        %v838 = vadd.f32 %v819, %v837
        %839 = vdwg.mxu0
        %v840 = vmax.f32 %v831, 0.0
        %v841 = vmax.f32 %v833, 0.0
        %v842 = vmax.f32 %v836, 0.0
        %v843 = vmax.f32 %v838, 0.0
        %v844 = vpack.c.bf16 %v841, %v840
        %v845 = vpack.c.bf16 %v843, %v842
        %v846 = vld [vmem:[%s3] sm:$0xf]
        %v847 = vld [vmem:[%s3 + $0x4] sm:$0x3]
        %v848 = vld [vmem:[%s4] sm:$0x1]
        %v850 = vperm.slane %v848, 0
        %v854 = vunpack.c.l.b16 %v846
        %v855 = vunpack.c.l.b16 %v847
        %v856 = vpack.c.b16 %v855, %v854
        %vm857 = vcmask 89088
        %v859 = vsel %vm857, %v844, 0
        %v862 = vsel %vm857, %v845, 0
        %vm864 = vcmask 1044480
        %vm865 = vcmask 1045504
        %v866 = vsel %vm864, 4294967295, 65535
        %v867 = vsel %vm865, %v866, 0
        %v869 = vand.u32 %v856, %v867
        %871 = vmatpush.bf16.msra.mxu0 0
        %872 = vmatpush.bf16.msra.mxu0 0
        %873 = vmatpush.bf16.msra.mxu0 0
        %874 = vmatpush.bf16.msra.mxu0 0
        %875 = vmatpush.bf16.msra.mxu0 0
        %876 = vmatpush.bf16.msra.mxu0 0
        %877 = vmatpush.bf16.msra.mxu0 0
        %878 = vmatpush.bf16.msra.mxu0 %v869
        %879 = vmatmul.bf16.gmra.mxu0 %v859
        %v880 = vpop.f32.mrf.mxu0
        %v881 = vadd.f32 %v850, %v880
        %v882 = vpop.f32.mrf.mxu0
        %v883 = vadd.f32 %v850, %v882
        %884 = vmatmul.bf16.gmra.mxu0 %v862
        %v885 = vpop.f32.mrf.mxu0
        %v886 = vadd.f32 %v850, %v885
        %v887 = vpop.f32.mrf.mxu0
        %v888 = vadd.f32 %v850, %v887
        %889 = vdwg.mxu0
        %vm890 = vcmask 80896
        %891 = vst.msk [vmem:[%s249] sm:$0xff] %vm890, %v881
        %892 = vst.msk [vmem:[%s249 + $0x8] sm:$0xff] %vm890, %v883
        %893 = vst.msk [vmem:[%s249 + $0x10] sm:$0xff] %vm890, %v886
        %894 = vst.msk [vmem:[%s249 + $0x18] sm:$0xff] %vm890, %v888
        %s895 = sand.u32 %s137, 1
        %s896 = sand.u32 %s137, 1
        %s897 = smul.addr %s896, 32
        %s898 = scalar_lea.vmem [#allocation4], %s897
        // Predicated region
        $region45: #{tpu_custom_call.1} parent=39 // pred_check
          %p899 = pneg %p147
        $region46: #{tpu_custom_call.1} parent=39 // pred_check_branch
          %901 = sbr.rel (%p899) target = $region48
        $region47: #{tpu_custom_call.1} parent=39 // pred_region
          %s902 = smul.u32 4, %s19
          %s903 = ssub.s32 10, %s902
          %p904 = scmp.lt.s32.totalorder %s903, 4
          %s905 = scalar_select %p904, %s903, 4
          %s906 = smul.u32 8, %s905
          %p907 = scmp.ne.s32.totalorder 0, %s906
          %s908 = smul.addr %s902, 8
          %s909 = scalar_lea.vmem %s5, %s908
          // Predicated region
          $region49: #{tpu_custom_call.1} parent=47 // pred_check
            %p910 = pneg %p907
          $region50: #{tpu_custom_call.1} parent=47 // pred_check_branch
            %912 = sbr.rel (%p910) target = $region52
          $region51: #{tpu_custom_call.1} parent=47 // pred_region
            // Predicated region
            $region53: #{tpu_custom_call.1} parent=51 // pred_check
              _
            $region54: #{tpu_custom_call.1} parent=51 // pred_check_branch
              %914 = sbr.rel (0) target = $region56
            $region55: #{tpu_custom_call.1} parent=51 // pred_region
              // Predicated region
              $region75: #{tpu_custom_call.1} parent=55 // pred_check
                _
              $region76: #{tpu_custom_call.1} parent=55 // pred_check_branch
                %970 = sbr.rel (0) target = $region78
              $region77: #{tpu_custom_call.1} parent=55 // pred_region
                %s971 = sshrl.u32 %s905, 2
                // While loop
                $region79: #{tpu_custom_call.1} parent=77 // loop_pre_header
                  _
                $region80: #{tpu_custom_call.1} parent=77 // loop_header
                  %s973 = sphi 0, %s975
                  %p974 = scmp.ge.s32.totalorder %s973, %s971
                  %s978 = sphi 0, %s991
                  %s979 = sphi %s898, %s994
                  %s980 = sphi %s909, %s995
                $region81: #{tpu_custom_call.1} parent=77 // loop_header_branch
                  %977 = sbr.rel (%p974) target = $region85
                $region82: #{tpu_custom_call.1} parent=77 // loop_body
                  %v981 = vld [vmem:[%s979] sm:$0xff]
                  %982 = vst [vmem:[%s980] sm:$0xff] %v981
                  %v983 = vld [vmem:[%s979 + $0x8] sm:$0xff]
                  %984 = vst [vmem:[%s980 + $0x8] sm:$0xff] %v983
                  %v985 = vld [vmem:[%s979 + $0x10] sm:$0xff]
                  %986 = vst [vmem:[%s980 + $0x10] sm:$0xff] %v985
                  %v987 = vld [vmem:[%s979 + $0x18] sm:$0xff]
                  %988 = vst [vmem:[%s980 + $0x18] sm:$0xff] %v987
                  %s989 = sadd.s32 1, %s978
                  %p990 = scmp.ge.s32.totalorder %s989, %s971
                  %s991 = scalar_select %p990, 0, %s989
                  %s992 = smul.u32 %s991, 32
                  %s993 = smul.u32 %s991, 32
                  %s994 = scalar_lea.vmem %s898, %s992 [#allocation4]
                  %s995 = scalar_lea.vmem %s909, %s993
                $region83: #{tpu_custom_call.1} parent=77 // loop_footer
                  %s975 = sadd.s32 %s973, 1
                $region84: #{tpu_custom_call.1} parent=77 // loop_footer_branch
                  %972 = sbr.rel target = $region80
                $region85: #{tpu_custom_call.1} parent=77 // loop_exit
                  _
                %s996 = sshrl.u32 %s905, 2
                %s997 = sand.u32 %s905, 3
                %s998 = smul.u32 %s996, 4
                %s999 = smul.u32 8, %s998
                %s1000 = scalar_lea.vmem %s898, %s999 [#allocation4]
                %s1001 = smul.u32 8, %s998
                %s1002 = scalar_lea.vmem %s909, %s1001
                // While loop
                $region86: #{tpu_custom_call.1} parent=77 // loop_pre_header
                  _
                $region87: #{tpu_custom_call.1} parent=77 // loop_header
                  %s1004 = sphi 0, %s1006
                  %p1005 = scmp.ge.s32.totalorder %s1004, %s997
                  %s1009 = sphi 0, %s1016
                  %s1010 = sphi %s1000, %s1019
                  %s1011 = sphi %s1002, %s1020
                $region88: #{tpu_custom_call.1} parent=77 // loop_header_branch
                  %1008 = sbr.rel (%p1005) target = $region92
                $region89: #{tpu_custom_call.1} parent=77 // loop_body
                  %v1012 = vld [vmem:[%s1010] sm:$0xff]
                  %1013 = vst [vmem:[%s1011] sm:$0xff] %v1012
                  %s1014 = sadd.s32 1, %s1009
                  %p1015 = scmp.ge.s32.totalorder %s1014, %s997
                  %s1016 = scalar_select %p1015, 0, %s1014
                  %s1017 = smul.u32 %s1016, 8
                  %s1018 = smul.u32 %s1016, 8
                  %s1019 = scalar_lea.vmem %s1000, %s1017 [#allocation4]
                  %s1020 = scalar_lea.vmem %s1002, %s1018
                $region90: #{tpu_custom_call.1} parent=77 // loop_footer
                  %s1006 = sadd.s32 %s1004, 1
                $region91: #{tpu_custom_call.1} parent=77 // loop_footer_branch
                  %1003 = sbr.rel target = $region87
                $region92: #{tpu_custom_call.1} parent=77 // loop_exit
                  _
              $region78: #{tpu_custom_call.1} parent=55 // pred_fallthru
                _
              // Predicated region
              $region93: #{tpu_custom_call.1} parent=55 // pred_check
                _
              $region94: #{tpu_custom_call.1} parent=55 // pred_check_branch
                %1022 = sbr.rel target = $region96
              $region95: #{tpu_custom_call.1} parent=55 // pred_region
                _
              $region96: #{tpu_custom_call.1} parent=55 // pred_fallthru
                _
            $region56: #{tpu_custom_call.1} parent=51 // pred_fallthru
              _
            // Predicated region
            $region57: #{tpu_custom_call.1} parent=51 // pred_check
              _
            $region58: #{tpu_custom_call.1} parent=51 // pred_check_branch
              %916 = sbr.rel target = $region60
            $region59: #{tpu_custom_call.1} parent=51 // pred_region
              %s918 = ssub.s32 256, 1
              %s919 = sshrl.u32 %s905, 2
              // While loop
              $region61: #{tpu_custom_call.1} parent=59 // loop_pre_header
                _
              $region62: #{tpu_custom_call.1} parent=59 // loop_header
                %s921 = sphi 0, %s923
                %p922 = scmp.ge.s32.totalorder %s921, %s919
                %s926 = sphi 0, %s939
                %s927 = sphi %s898, %s942
                %s928 = sphi %s909, %s943
              $region63: #{tpu_custom_call.1} parent=59 // loop_header_branch
                %925 = sbr.rel (%p922) target = $region67
              $region64: #{tpu_custom_call.1} parent=59 // loop_body
                %v929 = vld [vmem:[%s927] sm:%s918]
                %930 = vst [vmem:[%s928] sm:%s918] %v929
                %v931 = vld [vmem:[%s927 + $0x8] sm:%s918]
                %932 = vst [vmem:[%s928 + $0x8] sm:%s918] %v931
                %v933 = vld [vmem:[%s927 + $0x10] sm:%s918]
                %934 = vst [vmem:[%s928 + $0x10] sm:%s918] %v933
                %v935 = vld [vmem:[%s927 + $0x18] sm:%s918]
                %936 = vst [vmem:[%s928 + $0x18] sm:%s918] %v935
                %s937 = sadd.s32 1, %s926
                %p938 = scmp.ge.s32.totalorder %s937, %s919
                %s939 = scalar_select %p938, 0, %s937
                %s940 = smul.u32 %s939, 32
                %s941 = smul.u32 %s939, 32
                %s942 = scalar_lea.vmem %s898, %s940 [#allocation4]
                %s943 = scalar_lea.vmem %s909, %s941
              $region65: #{tpu_custom_call.1} parent=59 // loop_footer
                %s923 = sadd.s32 %s921, 1
              $region66: #{tpu_custom_call.1} parent=59 // loop_footer_branch
                %920 = sbr.rel target = $region62
              $region67: #{tpu_custom_call.1} parent=59 // loop_exit
                _
              %s944 = sshrl.u32 %s905, 2
              %s945 = sand.u32 %s905, 3
              %s946 = smul.u32 %s944, 4
              %s947 = smul.u32 8, %s946
              %s948 = scalar_lea.vmem %s898, %s947 [#allocation4]
              %s949 = smul.u32 8, %s946
              %s950 = scalar_lea.vmem %s909, %s949
              // While loop
              $region68: #{tpu_custom_call.1} parent=59 // loop_pre_header
                _
              $region69: #{tpu_custom_call.1} parent=59 // loop_header
                %s952 = sphi 0, %s954
                %p953 = scmp.ge.s32.totalorder %s952, %s945
                %s957 = sphi 0, %s964
                %s958 = sphi %s948, %s967
                %s959 = sphi %s950, %s968
              $region70: #{tpu_custom_call.1} parent=59 // loop_header_branch
                %956 = sbr.rel (%p953) target = $region74
              $region71: #{tpu_custom_call.1} parent=59 // loop_body
                %v960 = vld [vmem:[%s958] sm:%s918]
                %961 = vst [vmem:[%s959] sm:%s918] %v960
                %s962 = sadd.s32 1, %s957
                %p963 = scmp.ge.s32.totalorder %s962, %s945
                %s964 = scalar_select %p963, 0, %s962
                %s965 = smul.u32 %s964, 8
                %s966 = smul.u32 %s964, 8
                %s967 = scalar_lea.vmem %s948, %s965 [#allocation4]
                %s968 = scalar_lea.vmem %s950, %s966
              $region72: #{tpu_custom_call.1} parent=59 // loop_footer
                %s954 = sadd.s32 %s952, 1
              $region73: #{tpu_custom_call.1} parent=59 // loop_footer_branch
                %951 = sbr.rel target = $region69
              $region74: #{tpu_custom_call.1} parent=59 // loop_exit
                _
            $region60: #{tpu_custom_call.1} parent=51 // pred_fallthru
              _
          $region52: #{tpu_custom_call.1} parent=47 // pred_fallthru
            _
          %1023 = vnop
        $region48: #{tpu_custom_call.1} parent=39 // pred_fallthru
          _
      $region40: #{tpu_custom_call.1} parent=5 // pred_fallthru
        _
      %p1024 = scmp.le.s32.totalorder 2, %s14
      // Predicated region
      $region97: #{tpu_custom_call.1} parent=5 // pred_check
        %p1025 = pneg %p1024
      $region98: #{tpu_custom_call.1} parent=5 // pred_check_branch
        %1027 = sbr.rel (%p1025) target = $region100
      $region99: #{tpu_custom_call.1} parent=5 // pred_region
        %s1028 = ssub.s32 %s14, 2
        // Predicated region
        $region101: #{tpu_custom_call.1} parent=99 // pred_check
          %p1029 = pneg %p153
        $region102: #{tpu_custom_call.1} parent=99 // pred_check_branch
          %1031 = sbr.rel (%p1029) target = $region104
        $region103: #{tpu_custom_call.1} parent=99 // pred_region
          %s1032 = sand.u32 %s138, 1
          %s1033 = sand.u32 %s138, 1
          %s1034 = smul.addr %s1033, 32
          %s1035 = scalar_lea.vmem [#allocation4], %s1034
        $region104: #{tpu_custom_call.1} parent=99 // pred_fallthru
          _
      $region100: #{tpu_custom_call.1} parent=5 // pred_fallthru
        _
    $region6: #{tpu_custom_call.1} parent=1 // loop_footer
      %s18 = sadd.s32 1, %s14
    $region7: #{tpu_custom_call.1} parent=1 // loop_footer_branch
      %13 = sbr.rel target = $region3
    $region8: #{tpu_custom_call.1} parent=1 // loop_exit
      _
    %1036 = vsyncpa [#allocation3], 1
    %s1037 = scalar_lea.sflag [#allocation3], 1
    %1038 = vsyncpa %s1037, 1

</llo_original>
